<compile_context>
chip_gen: v6e
topology: v6e:2x2x1
jax: 0.10.0
libtpu: 0.0.40
codegen_flags: <defaults>
</compile_context>

<pallas_src>
import functools

import jax
import jax.numpy as jnp
import numpy as np
from jax import lax
from jax.experimental import pallas as pl
from jax.experimental.pallas import tpu as pltpu

OUT_LANES = 128                     # per-batch scalars broadcast across one lane-dense row
_CM = 128                           # rows of the distance tile produced per MXU chunk
_BIG_INIT = 1.0e30                  # running-min init (>> any real/pad distance ~1.2e13)


def _f1_kernel(gn,                              # static: lane width of each MXU chunk
               scal_ref,                        # SMEM (4,) f32: [thr, 1/N1, 1/N2, 0]
               a_ref, b_ref,                    # VMEM (8, TM) / (8, TN) homogeneous tiles
               f_ref, p1_ref, p2_ref,           # outputs (1, 1, OUT_LANES)
               dist1_ref,                       # VMEM (TM, 128) lane-dense running row min
               dist2_ref,                       # VMEM (NJ*8, TN) sublane-dense running col min
               cnt1_ref, cnt2_ref):             # SMEM (1,) f32 threshold counts
    i = pl.program_id(1)                        # N1 tile index
    j = pl.program_id(2)                        # N2 tile index
    last_i = pl.num_programs(1) - 1
    last_j = pl.num_programs(2) - 1

    tm = dist1_ref.shape[0]
    tn = dist2_ref.shape[1]
    n_c = tm // _CM
    n_g = tn // gn

    thr = scal_ref[0]
    inv_n1 = scal_ref[1]
    inv_n2 = scal_ref[2]

    # New N1 tile -> reset the lane-dense dist1 accumulator.
    @pl.when(j == 0)
    def _():
        dist1_ref[...] = jnp.full(dist1_ref.shape, _BIG_INIT, dist1_ref.dtype)

    # Sublane-dense partial column mins for this step, carried in registers.
    d2_slabs = [None] * n_g

    for c in range(n_c):
        a_c = a_ref[:, c * _CM:(c + 1) * _CM]                     # (8, CM) aligned load
        part1 = None                                              # (CM, 128) over g
        for g in range(n_g):
            b_g = b_ref[:, g * gn:(g + 1) * gn]                   # (8, GN) aligned load
            # One MXU chunk of pairwise squared distances; stays in vregs.
            d_cg = lax.dot_general(a_c, b_g, (((0,), (0,)), ((), ())),
                                   preferred_element_type=jnp.float32)   # (CM, GN)
            # Lane-group partial row mins (pure VPU, aligned vreg slices).
            rmin = d_cg[:, 0:128]
            for q in range(1, gn // 128):
                rmin = jnp.minimum(rmin, d_cg[:, q * 128:(q + 1) * 128])
            part1 = rmin if part1 is None else jnp.minimum(part1, rmin)
            # Sublane-group partial column mins (pure VPU).
            cmin = d_cg[0:8, :]
            for r in range(1, _CM // 8):
                cmin = jnp.minimum(cmin, d_cg[r * 8:(r + 1) * 8, :])
            d2_slabs[g] = cmin if d2_slabs[g] is None else jnp.minimum(d2_slabs[g], cmin)
        # Fold this chunk's row-min partial into the persistent dist1 accumulator
        # (full-width, sublane-aligned slab store -- no masked vst).
        sl = slice(c * _CM, (c + 1) * _CM)
        dist1_ref[sl, :] = jnp.minimum(dist1_ref[sl, :], part1)

    # Fold this step's column-min partials into the per-N2-tile dist2 accumulator.
    row = pl.multiple_of(j * 8, 8)

    @pl.when(i == 0)
    def _():
        for g in range(n_g):
            dist2_ref[pl.ds(row, 8), g * gn:(g + 1) * gn] = d2_slabs[g]

    @pl.when(i > 0)
    def _():
        for g in range(n_g):
            cur = dist2_ref[pl.ds(row, 8), g * gn:(g + 1) * gn]
            dist2_ref[pl.ds(row, 8), g * gn:(g + 1) * gn] = jnp.minimum(cur, d2_slabs[g])

    # dist1 for this N1 tile is complete -> count(dist1 < thr).
    # (single XLU cross-lane reduce per completed tile, off the hot path)
    @pl.when(j == last_j)
    def _():
        m1 = jnp.min(dist1_ref[...], axis=1, keepdims=True)       # (TM, 1)
        tile_cnt = jnp.sum((m1 < thr).astype(jnp.float32))
        prev = jnp.where(i == 0, jnp.float32(0.0), cnt1_ref[0])
        cnt1_ref[0] = prev + tile_cnt

    # dist2 for this N2 tile is complete -> count(dist2 < thr).
    @pl.when(i == last_i)
    def _():
        m2 = jnp.min(dist2_ref[pl.ds(row, 8), :], axis=0, keepdims=True)   # (1, TN)
        tile_cnt = jnp.sum((m2 < thr).astype(jnp.float32))
        prev = jnp.where(j == 0, jnp.float32(0.0), cnt2_ref[0])
        cnt2_ref[0] = prev + tile_cnt

    # Finalize precision_1 / precision_2 / fscore for this batch element.
    @pl.when((i == last_i) & (j == last_j))
    def _():
        prec1 = cnt1_ref[0] * inv_n1
        prec2 = cnt2_ref[0] * inv_n2
        denom = prec1 + prec2
        # torch: fscore[isnan(fscore)] = 0   (NaN only arises from 0/0)
        f = jnp.where(denom > 0.0,
                      2.0 * prec1 * prec2 / jnp.where(denom > 0.0, denom, 1.0),
                      0.0)
        f_ref[...] = jnp.full(f_ref.shape, f, dtype=f_ref.dtype)
        p1_ref[...] = jnp.full(p1_ref.shape, prec1, dtype=p1_ref.dtype)
        p2_ref[...] = jnp.full(p2_ref.shape, prec2, dtype=p2_ref.dtype)


def _round_up(x, m):
    return (x + m - 1) // m * m


@functools.partial(jax.jit, static_argnums=(3, 4))
def _f1_score_impl(array1, array2, threshold, tile_m, tile_n):
    B, N1, D = array1.shape
    B2, N2, D2 = array2.shape
    assert B == B2 and D == D2
    assert D + 2 <= 8, "coordinate dim must fit the 8-sublane homogeneous layout"
    # f32 SMEM counters are exact for integer counts up to 2^24.
    assert N1 < (1 << 24) and N2 < (1 << 24)

    # Point (lane) axis tiles must be multiples of 128.
    TM = _round_up(min(int(tile_m), _round_up(N1, 128)), 128)
    TN = _round_up(min(int(tile_n), _round_up(N2, 128)), 128)
    N1p = _round_up(N1, TM)
    N2p = _round_up(N2, TN)
    # Lane width of the register-resident MXU chunks (must divide TN).
    GN = 256 if TN % 256 == 0 else 128

    a = array1.astype(jnp.float32)
    b = array2.astype(jnp.float32)

    # Fake padding points placed far apart: never under the threshold and never
    # smaller than a real point's true nearest-neighbour distance.
    BIG = jnp.float32(1.0e6)
    a_pad = jnp.full((B, N1p, D), BIG, jnp.float32).at[:, :N1, :].set(a)
    b_pad = jnp.full((B, N2p, D), -BIG, jnp.float32).at[:, :N2, :].set(b)

    sq_a = jnp.sum(a_pad * a_pad, axis=-1)        # (B, N1p)
    sq_b = jnp.sum(b_pad * b_pad, axis=-1)        # (B, N2p)

    # Homogeneous transposed layout: coords on sublanes, points on lanes, so
    # d[i, j] = sum_k A'[k, i] * B'[k, j] = ||a_i - b_j||^2 in one MXU op.
    a_h = jnp.zeros((B, 8, N1p), jnp.float32)
    a_h = a_h.at[:, :D, :].set(jnp.transpose(a_pad, (0, 2, 1)) * -2.0)
    a_h = a_h.at[:, D, :].set(sq_a)
    a_h = a_h.at[:, D + 1, :].set(1.0)

    b_h = jnp.zeros((B, 8, N2p), jnp.float32)
    b_h = b_h.at[:, :D, :].set(jnp.transpose(b_pad, (0, 2, 1)))
    b_h = b_h.at[:, D, :].set(1.0)
    b_h = b_h.at[:, D + 1, :].set(sq_b)

    scal = jnp.stack([jnp.asarray(threshold, jnp.float32),
                      jnp.float32(1.0 / N1),
                      jnp.float32(1.0 / N2),
                      jnp.float32(0.0)])

    NI = N1p // TM
    NJ = N2p // TN
    grid = (B, NI, NJ)

    kernel = functools.partial(_f1_kernel, GN)
    out_shapes = tuple(jax.ShapeDtypeStruct((B, 1, OUT_LANES), jnp.float32)
                       for _ in range(3))
    out_spec = pl.BlockSpec((1, 1, OUT_LANES), lambda bb, ii, jj, s: (bb, 0, 0))

    f, p1, p2 = pl.pallas_call(
        kernel,
        out_shape=out_shapes,
        grid_spec=pltpu.PrefetchScalarGridSpec(
            num_scalar_prefetch=1,
            grid=grid,
            in_specs=[
                pl.BlockSpec((None, 8, TM), lambda bb, ii, jj, s: (bb, 0, ii)),
                pl.BlockSpec((None, 8, TN), lambda bb, ii, jj, s: (bb, 0, jj)),
            ],
            out_specs=[out_spec, out_spec, out_spec],
            scratch_shapes=[
                pltpu.VMEM((TM, 128), jnp.float32),       # dist1 running min (lane-dense)
                pltpu.VMEM((NJ * 8, TN), jnp.float32),    # dist2 running min (sublane-dense)
                pltpu.SMEM((1,), jnp.float32),            # count(dist1 < thr)
                pltpu.SMEM((1,), jnp.float32),            # count(dist2 < thr)
            ],
        ),
        compiler_params=pltpu.CompilerParams(
            dimension_semantics=("parallel", "arbitrary", "arbitrary"),
            vmem_limit_bytes=32 * 1024 * 1024,
        ),
    )(scal, a_h, b_h)

    return f[:, 0, 0], p1[:, 0, 0], p2[:, 0, 0]


def f1_score(array1, array2, threshold=0.001, *, tile_m=512, tile_n=1024):
    """array1: (B, N1, D), array2: (B, N2, D) -> (fscore, precision_1, precision_2), each (B,)."""
    if array2.shape[1] > array1.shape[1]:
        # Chamfer distance is symmetric: run the kernel with the smaller cloud as
        # "cloud 2" so the persistent dist2 scratch is bounded by min(N1, N2),
        # then swap the two precisions back.
        f, p2, p1 = _f1_score_impl(array2, array1, threshold, int(tile_m), int(tile_n))
        return f, p1, p2
    return _f1_score_impl(array1, array2, threshold, int(tile_m), int(tile_n))


def _reference(array1, array2, threshold):
    # Pure-JAX reference with identical semantics (verification only).
    a = array1.astype(jnp.float32)
    b = array2.astype(jnp.float32)
    d = (jnp.sum(a * a, -1)[:, :, None] + jnp.sum(b * b, -1)[:, None, :]
         - 2.0 * jnp.einsum("bnd,bmd->bnm", a, b))
    dist1 = jnp.min(d, axis=2)
    dist2 = jnp.min(d, axis=1)
    p1 = jnp.mean((dist1 < threshold).astype(jnp.float32), axis=1)
    p2 = jnp.mean((dist2 < threshold).astype(jnp.float32), axis=1)
    f = 2 * p1 * p2 / (p1 + p2)
    f = jnp.where(jnp.isnan(f), 0.0, f)
    return f, p1, p2


def _quantized_cloud(key, shape):
    # Coordinates quantized to multiples of 1/16 so squared distances are exact
    # multiples of 1/256: threshold comparisons are bitwise-stable between the
    # kernel and the reference (no borderline fp flips).
    return jnp.round(jax.random.uniform(key, shape, dtype=jnp.float32) * 16.0) / 16.0


if __name__ == "__main__":
    key = jax.random.PRNGKey(0)
    keys = jax.random.split(key, 8)
    D = 3

    def _check(a1, a2, thr, **tiles):
        got = jax.block_until_ready(f1_score(a1, a2, threshold=thr, **tiles))
        want = _reference(a1, a2, thr)
        for g, w in zip(got, want):
            np.testing.assert_allclose(np.asarray(g), np.asarray(w),
                                       rtol=1e-5, atol=1e-5)

    # Case 1: multi-tile in both grid axes (3 x 3), padding on cloud 2.
    _check(_quantized_cloud(keys[0], (2, 384, D)),
           _quantized_cloud(keys[1], (2, 320, D)),
           0.01, tile_m=128, tile_n=128)

    # Case 2: N2 > N1 -> symmetric-swap path; multi-chunk inner loops (n_c=2, n_g=3).
    _check(_quantized_cloud(keys[2], (2, 300, D)),
           _quantized_cloud(keys[3], (2, 700, D)),
           0.05, tile_m=256, tile_n=512)

    # Case 3: B=1, multiple i and j tiles with 256-lane chunks (n_c=2, n_g=2).
    _check(_quantized_cloud(keys[4], (1, 1200, D)),
           _quantized_cloud(keys[5], (1, 1100, D)),
           0.02, tile_m=256, tile_n=512)

    # Case 4: default tiles at module-typical small shapes (single grid step).
    _check(_quantized_cloud(keys[6], (2, 128, D)),
           _quantized_cloud(keys[7], (2, 64, D)),
           0.03)

    print("KERNEL_OK")
</pallas_src>

<mosaic_0001>
module attributes {stable_mosaic.version = 11 : i64} {
  func.func @_f1_kernel(%arg0: i32, %arg1: i32, %arg2: i32, %arg3: memref<4xf32, #tpu.memory_space<smem>>, %arg4: memref<1x8x128xf32, #tpu.memory_space<vmem>>, %arg5: memref<1x8x128xf32, #tpu.memory_space<vmem>>, %arg6: memref<1x1x128xf32, #tpu.memory_space<vmem>>, %arg7: memref<1x1x128xf32, #tpu.memory_space<vmem>>, %arg8: memref<1x1x128xf32, #tpu.memory_space<vmem>>, %arg9: memref<128x128xf32, #tpu.memory_space<vmem>>, %arg10: memref<24x128xf32, #tpu.memory_space<vmem>>, %arg11: memref<1xf32, #tpu.memory_space<smem>>, %arg12: memref<1xf32, #tpu.memory_space<smem>>) attributes {dimension_semantics = [#tpu.dimension_semantics<parallel>, #tpu.dimension_semantics<arbitrary>, #tpu.dimension_semantics<arbitrary>], iteration_bounds = array<i64: 2, 3, 3>, scalar_prefetch = 1 : i64, scratch_operands = 4 : i64, tpu.core_type = #tpu.core_type<tc>, window_params = [{transform_indices = @transform_0, window_bounds = array<i64: 1, 8, 128>}, {transform_indices = @transform_1, window_bounds = array<i64: 1, 8, 128>}, {transform_indices = @transform_2, window_bounds = array<i64: 1, 1, 128>}, {transform_indices = @transform_3, window_bounds = array<i64: 1, 1, 128>}, {transform_indices = @transform_4, window_bounds = array<i64: 1, 1, 128>}]} {
    %c0 = arith.constant 0 : index
    %0 = memref.load %arg3[%c0] : memref<4xf32, #tpu.memory_space<smem>>
    %c1 = arith.constant 1 : index
    %1 = memref.load %arg3[%c1] : memref<4xf32, #tpu.memory_space<smem>>
    %c2 = arith.constant 2 : index
    %2 = memref.load %arg3[%c2] : memref<4xf32, #tpu.memory_space<smem>>
    %c0_i32 = arith.constant 0 : i32
    %3 = arith.cmpi eq, %arg2, %c0_i32 : i32
    %4 = arith.extui %3 : i1 to i32
    %c0_i32_0 = arith.constant 0 : i32
    %5 = arith.cmpi ne, %4, %c0_i32_0 : i32
    scf.if %5 {
      %cst_21 = arith.constant 1.000000e+30 : f32
      %64 = vector.broadcast %cst_21 : f32 to vector<128x128xf32>
      %c0_22 = arith.constant 0 : index
      %c0_23 = arith.constant 0 : index
      %65 = vector.load %arg9[%c0_22, %c0_23] : memref<128x128xf32, #tpu.memory_space<vmem>>, vector<128x128xf32>
      tpu.vector_store %arg9[%c0_22, %c0_23], %64 {strides = array<i32>} : memref<128x128xf32, #tpu.memory_space<vmem>>, vector<128x128xf32>,
    } else {
    }
    %c0_1 = arith.constant 0 : index
    %c0_2 = arith.constant 0 : index
    %c0_3 = arith.constant 0 : index
    %6 = vector.load %arg4[%c0_1, %c0_2, %c0_3] : memref<1x8x128xf32, #tpu.memory_space<vmem>>, vector<1x8x128xf32>
    %7 = vector.shape_cast %6 : vector<1x8x128xf32> to vector<8x128xf32>
    %c0_4 = arith.constant 0 : index
    %c0_5 = arith.constant 0 : index
    %c0_6 = arith.constant 0 : index
    %8 = vector.load %arg5[%c0_4, %c0_5, %c0_6] : memref<1x8x128xf32, #tpu.memory_space<vmem>>, vector<1x8x128xf32>
    %9 = vector.shape_cast %8 : vector<1x8x128xf32> to vector<8x128xf32>
    %cst = arith.constant dense<0.000000e+00> : vector<128x128xf32>
    %10 = tpu.matmul %7, %9, %cst {dimension_numbers = #tpu.dot_dimension_numbers<[0], [0], [1], [1], [0, 1, 1, 1], [], []>} : vector<8x128xf32>, vector<8x128xf32>, vector<128x128xf32> -> vector<128x128xf32>
    %11 = vector.extract_strided_slice %10 {offsets = [0, 0], sizes = [8, 128], strides = [1, 1]} : vector<128x128xf32> to vector<8x128xf32>
    %12 = vector.extract_strided_slice %10 {offsets = [8, 0], sizes = [8, 128], strides = [1, 1]} : vector<128x128xf32> to vector<8x128xf32>
    %13 = arith.minimumf %11, %12 : vector<8x128xf32>
    %14 = vector.extract_strided_slice %10 {offsets = [16, 0], sizes = [8, 128], strides = [1, 1]} : vector<128x128xf32> to vector<8x128xf32>
    %15 = arith.minimumf %13, %14 : vector<8x128xf32>
    %16 = vector.extract_strided_slice %10 {offsets = [24, 0], sizes = [8, 128], strides = [1, 1]} : vector<128x128xf32> to vector<8x128xf32>
    %17 = arith.minimumf %15, %16 : vector<8x128xf32>
    %18 = vector.extract_strided_slice %10 {offsets = [32, 0], sizes = [8, 128], strides = [1, 1]} : vector<128x128xf32> to vector<8x128xf32>
    %19 = arith.minimumf %17, %18 : vector<8x128xf32>
    %20 = vector.extract_strided_slice %10 {offsets = [40, 0], sizes = [8, 128], strides = [1, 1]} : vector<128x128xf32> to vector<8x128xf32>
    %21 = arith.minimumf %19, %20 : vector<8x128xf32>
    %22 = vector.extract_strided_slice %10 {offsets = [48, 0], sizes = [8, 128], strides = [1, 1]} : vector<128x128xf32> to vector<8x128xf32>
    %23 = arith.minimumf %21, %22 : vector<8x128xf32>
    %24 = vector.extract_strided_slice %10 {offsets = [56, 0], sizes = [8, 128], strides = [1, 1]} : vector<128x128xf32> to vector<8x128xf32>
    %25 = arith.minimumf %23, %24 : vector<8x128xf32>
    %26 = vector.extract_strided_slice %10 {offsets = [64, 0], sizes = [8, 128], strides = [1, 1]} : vector<128x128xf32> to vector<8x128xf32>
    %27 = arith.minimumf %25, %26 : vector<8x128xf32>
    %28 = vector.extract_strided_slice %10 {offsets = [72, 0], sizes = [8, 128], strides = [1, 1]} : vector<128x128xf32> to vector<8x128xf32>
    %29 = arith.minimumf %27, %28 : vector<8x128xf32>
    %30 = vector.extract_strided_slice %10 {offsets = [80, 0], sizes = [8, 128], strides = [1, 1]} : vector<128x128xf32> to vector<8x128xf32>
    %31 = arith.minimumf %29, %30 : vector<8x128xf32>
    %32 = vector.extract_strided_slice %10 {offsets = [88, 0], sizes = [8, 128], strides = [1, 1]} : vector<128x128xf32> to vector<8x128xf32>
    %33 = arith.minimumf %31, %32 : vector<8x128xf32>
    %34 = vector.extract_strided_slice %10 {offsets = [96, 0], sizes = [8, 128], strides = [1, 1]} : vector<128x128xf32> to vector<8x128xf32>
    %35 = arith.minimumf %33, %34 : vector<8x128xf32>
    %36 = vector.extract_strided_slice %10 {offsets = [104, 0], sizes = [8, 128], strides = [1, 1]} : vector<128x128xf32> to vector<8x128xf32>
    %37 = arith.minimumf %35, %36 : vector<8x128xf32>
    %38 = vector.extract_strided_slice %10 {offsets = [112, 0], sizes = [8, 128], strides = [1, 1]} : vector<128x128xf32> to vector<8x128xf32>
    %39 = arith.minimumf %37, %38 : vector<8x128xf32>
    %40 = vector.extract_strided_slice %10 {offsets = [120, 0], sizes = [8, 128], strides = [1, 1]} : vector<128x128xf32> to vector<8x128xf32>
    %41 = arith.minimumf %39, %40 : vector<8x128xf32>
    %c0_7 = arith.constant 0 : index
    %c0_8 = arith.constant 0 : index
    %42 = vector.load %arg9[%c0_7, %c0_8] : memref<128x128xf32, #tpu.memory_space<vmem>>, vector<128x128xf32>
    %43 = arith.minimumf %42, %10 : vector<128x128xf32>
    %c0_9 = arith.constant 0 : index
    %c0_10 = arith.constant 0 : index
    %44 = vector.load %arg9[%c0_9, %c0_10] : memref<128x128xf32, #tpu.memory_space<vmem>>, vector<128x128xf32>
    tpu.vector_store %arg9[%c0_9, %c0_10], %43 {strides = array<i32>} : memref<128x128xf32, #tpu.memory_space<vmem>>, vector<128x128xf32>,
    %c8_i32 = arith.constant 8 : i32
    %45 = arith.muli %arg2, %c8_i32 : i32
    %46 = tpu.assume_multiple %45, 8 : i32
    %c0_i32_11 = arith.constant 0 : i32
    %47 = arith.cmpi eq, %arg1, %c0_i32_11 : i32
    %48 = arith.extui %47 : i1 to i32
    %c0_i32_12 = arith.constant 0 : i32
    %49 = arith.cmpi ne, %48, %c0_i32_12 : i32
    scf.if %49 {
      %64 = arith.index_cast %46 : i32 to index
      %c0_21 = arith.constant 0 : index
      %65 = vector.load %arg10[%64, %c0_21] : memref<24x128xf32, #tpu.memory_space<vmem>>, vector<8x128xf32>
      tpu.vector_store %arg10[%64, %c0_21], %41 {strides = array<i32>} : memref<24x128xf32, #tpu.memory_space<vmem>>, vector<8x128xf32>,
    } else {
    }
    %c0_i32_13 = arith.constant 0 : i32
    %50 = arith.cmpi sgt, %arg1, %c0_i32_13 : i32
    %51 = arith.extui %50 : i1 to i32
    %c0_i32_14 = arith.constant 0 : i32
    %52 = arith.cmpi ne, %51, %c0_i32_14 : i32
    scf.if %52 {
      %64 = arith.index_cast %46 : i32 to index
      %c0_21 = arith.constant 0 : index
      %65 = vector.load %arg10[%64, %c0_21] : memref<24x128xf32, #tpu.memory_space<vmem>>, vector<8x128xf32>
      %66 = arith.minimumf %65, %41 : vector<8x128xf32>
      %67 = arith.index_cast %46 : i32 to index
      %c0_22 = arith.constant 0 : index
      %68 = vector.load %arg10[%67, %c0_22] : memref<24x128xf32, #tpu.memory_space<vmem>>, vector<8x128xf32>
      tpu.vector_store %arg10[%67, %c0_22], %66 {strides = array<i32>} : memref<24x128xf32, #tpu.memory_space<vmem>>, vector<8x128xf32>,
    } else {
    }
    %c2_i32 = arith.constant 2 : i32
    %53 = arith.cmpi eq, %arg2, %c2_i32 : i32
    %54 = arith.extui %53 : i1 to i32
    %c0_i32_15 = arith.constant 0 : i32
    %55 = arith.cmpi ne, %54, %c0_i32_15 : i32
    scf.if %55 {
      %c0_21 = arith.constant 0 : index
      %c0_22 = arith.constant 0 : index
      %64 = vector.load %arg9[%c0_21, %c0_22] : memref<128x128xf32, #tpu.memory_space<vmem>>, vector<128x128xf32>
      %cst_23 = arith.constant dense<0x7F800000> : vector<128xf32>
      %65 = vector.multi_reduction <minimumf>, %64, %cst_23 [1] : vector<128x128xf32> to vector<128xf32>
      %66 = vector.shape_cast %65 : vector<128xf32> to vector<128x1xf32>
      %67 = vector.broadcast %0 : f32 to vector<128x1xf32>
      %68 = arith.cmpf olt, %66, %67 : vector<128x1xf32>
      %69 = arith.extui %68 : vector<128x1xi1> to vector<128x1xi32>
      %70 = arith.sitofp %69 : vector<128x1xi32> to vector<128x1xf32>
      %71 = vector.shape_cast %70 : vector<128x1xf32> to vector<1x128x1xf32>
      %cst_24 = arith.constant dense<0.000000e+00> : vector<1xf32>
      %72 = vector.multi_reduction <add>, %71, %cst_24 [1, 2] : vector<1x128x1xf32> to vector<1xf32>
      %73 = vector.shape_cast %72 : vector<1xf32> to vector<1x1x1xf32>
      %74 = vector.extract %73[0, 0, 0] : f32 from vector<1x1x1xf32>
      %c0_i32_25 = arith.constant 0 : i32
      %75 = arith.cmpi eq, %arg1, %c0_i32_25 : i32
      %c0_26 = arith.constant 0 : index
      %76 = memref.load %arg11[%c0_26] : memref<1xf32, #tpu.memory_space<smem>>
      %cst_27 = arith.constant 0.000000e+00 : f32
      %77 = arith.select %75, %cst_27, %76 : f32
      %78 = arith.addf %77, %74 : f32
      %c0_28 = arith.constant 0 : index
      %79 = memref.load %arg11[%c0_28] : memref<1xf32, #tpu.memory_space<smem>>
      memref.store %78, %arg11[%c0_28] : memref<1xf32, #tpu.memory_space<smem>>
    } else {
    }
    %c2_i32_16 = arith.constant 2 : i32
    %56 = arith.cmpi eq, %arg1, %c2_i32_16 : i32
    %57 = arith.extui %56 : i1 to i32
    %c0_i32_17 = arith.constant 0 : i32
    %58 = arith.cmpi ne, %57, %c0_i32_17 : i32
    scf.if %58 {
      %64 = arith.index_cast %46 : i32 to index
      %c0_21 = arith.constant 0 : index
      %65 = vector.load %arg10[%64, %c0_21] : memref<24x128xf32, #tpu.memory_space<vmem>>, vector<8x128xf32>
      %cst_22 = arith.constant dense<0x7F800000> : vector<128xf32>
      %66 = vector.multi_reduction <minimumf>, %65, %cst_22 [0] : vector<8x128xf32> to vector<128xf32>
      %67 = vector.shape_cast %66 : vector<128xf32> to vector<1x128xf32>
      %68 = vector.broadcast %0 : f32 to vector<1x128xf32>
      %69 = arith.cmpf olt, %67, %68 : vector<1x128xf32>
      %70 = arith.extui %69 : vector<1x128xi1> to vector<1x128xi32>
      %71 = arith.sitofp %70 : vector<1x128xi32> to vector<1x128xf32>
      %72 = vector.shape_cast %71 : vector<1x128xf32> to vector<1x1x128xf32>
      %cst_23 = arith.constant dense<0.000000e+00> : vector<1xf32>
      %73 = vector.multi_reduction <add>, %72, %cst_23 [1, 2] : vector<1x1x128xf32> to vector<1xf32>
      %74 = vector.shape_cast %73 : vector<1xf32> to vector<1x1x1xf32>
      %75 = vector.extract %74[0, 0, 0] : f32 from vector<1x1x1xf32>
      %c0_i32_24 = arith.constant 0 : i32
      %76 = arith.cmpi eq, %arg2, %c0_i32_24 : i32
      %c0_25 = arith.constant 0 : index
      %77 = memref.load %arg12[%c0_25] : memref<1xf32, #tpu.memory_space<smem>>
      %cst_26 = arith.constant 0.000000e+00 : f32
      %78 = arith.select %76, %cst_26, %77 : f32
      %79 = arith.addf %78, %75 : f32
      %c0_27 = arith.constant 0 : index
      %80 = memref.load %arg12[%c0_27] : memref<1xf32, #tpu.memory_space<smem>>
      memref.store %79, %arg12[%c0_27] : memref<1xf32, #tpu.memory_space<smem>>
    } else {
    }
    %c2_i32_18 = arith.constant 2 : i32
    %59 = arith.cmpi eq, %arg1, %c2_i32_18 : i32
    %c2_i32_19 = arith.constant 2 : i32
    %60 = arith.cmpi eq, %arg2, %c2_i32_19 : i32
    %61 = arith.andi %59, %60 : i1
    %62 = arith.extui %61 : i1 to i32
    %c0_i32_20 = arith.constant 0 : i32
    %63 = arith.cmpi ne, %62, %c0_i32_20 : i32
    scf.if %63 {
      %c0_21 = arith.constant 0 : index
      %64 = memref.load %arg11[%c0_21] : memref<1xf32, #tpu.memory_space<smem>>
      %65 = arith.mulf %64, %1 : f32
      %c0_22 = arith.constant 0 : index
      %66 = memref.load %arg12[%c0_22] : memref<1xf32, #tpu.memory_space<smem>>
      %67 = arith.mulf %66, %2 : f32
      %68 = arith.addf %65, %67 : f32
      %cst_23 = arith.constant 0.000000e+00 : f32
      %69 = arith.cmpf ogt, %68, %cst_23 : f32
      %cst_24 = arith.constant 2.000000e+00 : f32
      %70 = arith.mulf %cst_24, %65 : f32
      %71 = arith.mulf %70, %67 : f32
      %cst_25 = arith.constant 0.000000e+00 : f32
      %72 = arith.cmpf ogt, %68, %cst_25 : f32
      %cst_26 = arith.constant 1.000000e+00 : f32
      %73 = arith.select %72, %68, %cst_26 : f32
      %74 = arith.divf %71, %73 : f32
      %cst_27 = arith.constant 0.000000e+00 : f32
      %75 = arith.select %69, %74, %cst_27 : f32
      %76 = vector.broadcast %75 : f32 to vector<1x1x128xf32>
      %c0_28 = arith.constant 0 : index
      %c0_29 = arith.constant 0 : index
      %c0_30 = arith.constant 0 : index
      %77 = vector.load %arg6[%c0_28, %c0_29, %c0_30] : memref<1x1x128xf32, #tpu.memory_space<vmem>>, vector<1x1x128xf32>
      tpu.vector_store %arg6[%c0_28, %c0_29, %c0_30], %76 {strides = array<i32>} : memref<1x1x128xf32, #tpu.memory_space<vmem>>, vector<1x1x128xf32>,
      %78 = vector.broadcast %65 : f32 to vector<1x1x128xf32>
      %c0_31 = arith.constant 0 : index
      %c0_32 = arith.constant 0 : index
      %c0_33 = arith.constant 0 : index
      %79 = vector.load %arg7[%c0_31, %c0_32, %c0_33] : memref<1x1x128xf32, #tpu.memory_space<vmem>>, vector<1x1x128xf32>
      tpu.vector_store %arg7[%c0_31, %c0_32, %c0_33], %78 {strides = array<i32>} : memref<1x1x128xf32, #tpu.memory_space<vmem>>, vector<1x1x128xf32>,
      %80 = vector.broadcast %67 : f32 to vector<1x1x128xf32>
      %c0_34 = arith.constant 0 : index
      %c0_35 = arith.constant 0 : index
      %c0_36 = arith.constant 0 : index
      %81 = vector.load %arg8[%c0_34, %c0_35, %c0_36] : memref<1x1x128xf32, #tpu.memory_space<vmem>>, vector<1x1x128xf32>
      tpu.vector_store %arg8[%c0_34, %c0_35, %c0_36], %80 {strides = array<i32>} : memref<1x1x128xf32, #tpu.memory_space<vmem>>, vector<1x1x128xf32>,
    } else {
    }
    return
  }
  func.func @transform_0(%arg0: i32, %arg1: i32, %arg2: i32, %arg3: memref<4xf32, #tpu.memory_space<smem>>) -> (i32, i32, i32) {
    %c0_i32 = arith.constant 0 : i32
    %c0_i32_0 = arith.constant 0 : i32
    return %arg0, %c0_i32, %arg1 : i32, i32, i32
  }
  func.func @transform_1(%arg0: i32, %arg1: i32, %arg2: i32, %arg3: memref<4xf32, #tpu.memory_space<smem>>) -> (i32, i32, i32) {
    %c0_i32 = arith.constant 0 : i32
    %c0_i32_0 = arith.constant 0 : i32
    return %arg0, %c0_i32, %arg2 : i32, i32, i32
  }
  func.func @transform_2(%arg0: i32, %arg1: i32, %arg2: i32, %arg3: memref<4xf32, #tpu.memory_space<smem>>) -> (i32, i32, i32) {
    %c0_i32 = arith.constant 0 : i32
    %c0_i32_0 = arith.constant 0 : i32
    %c0_i32_1 = arith.constant 0 : i32
    return %arg0, %c0_i32, %c0_i32_0 : i32, i32, i32
  }
  func.func @transform_3(%arg0: i32, %arg1: i32, %arg2: i32, %arg3: memref<4xf32, #tpu.memory_space<smem>>) -> (i32, i32, i32) {
    %c0_i32 = arith.constant 0 : i32
    %c0_i32_0 = arith.constant 0 : i32
    %c0_i32_1 = arith.constant 0 : i32
    return %arg0, %c0_i32, %c0_i32_0 : i32, i32, i32
  }
  func.func @transform_4(%arg0: i32, %arg1: i32, %arg2: i32, %arg3: memref<4xf32, #tpu.memory_space<smem>>) -> (i32, i32, i32) {
    %c0_i32 = arith.constant 0 : i32
    %c0_i32_0 = arith.constant 0 : i32
    %c0_i32_1 = arith.constant 0 : i32
    return %arg0, %c0_i32, %c0_i32_0 : i32, i32, i32
  }
}

</mosaic_0001>

<llo_original>
// kernel: _f1_score_impl.1
$region0: #{_f1_score_impl.1}
  #allocation0 [shape = 'u32[]', space=smem, size = 0x4, offset = 0x4, fixed_abs, tag = 'smem constant byte address 0x4 - core index']
  #allocation1 [shape = 'u32[144,128]{1,0:T(1,128)}', space=vmem, size = 0x12000, scoped, tag = 'internal scratch']
  #allocation2 [shape = 'f32[128,128]{1,0:T(8,128)}', space=vmem, size = 0x10000, scoped, tag = 'scratch operand']
  #allocation3 [shape = 'f32[24,128]{1,0:T(8,128)}', space=vmem, size = 0x3000, scoped, tag = 'scratch operand']
  #allocation4 [shape = 'f32[1]{0:T(128)}', space=smem, size = 0x200, scoped, tag = 'scratch operand']
  #allocation5 [shape = 'f32[1]{0:T(128)}', space=smem, size = 0x200, scoped, tag = 'scratch operand']
  #allocation6 [shape = 's32[1]{0}', space=sflag, size = 0x4, scoped, tag = 'scoped memory for _f1_score_impl.1']
  #allocation7 [shape = 'u8[512]{0}', space=smem, size = 0x200, scoped, tag = 'prefetched SMEM operand 0']
  %s0 = inlined_call_operand.vmem [shape: f32[4], index: 0, kind: input, shape index: {}]
  %s1 = inlined_call_operand.vmem [shape: f32[2,8,384], index: 1, kind: input, shape index: {}]
  %s2 = inlined_call_operand.vmem [shape: f32[2,8,384], index: 2, kind: input, shape index: {}]
  %s3 = inlined_call_operand.vmem [shape: f32[2,1,128], index: 3, kind: output, shape index: {0}]
  %s4 = inlined_call_operand.vmem [shape: f32[2,1,128], index: 4, kind: output, shape index: {1}]
  %s5 = inlined_call_operand.vmem [shape: f32[2,1,128], index: 5, kind: output, shape index: {2}]
  %6 = xla_tuple %s3, %s4, %s5
  %s7 = sld [smem:[#allocation0]]
  $region81: #{_f1_score_impl.1} parent=0
    _
  %s9 = ssub.s32 1, %s7
  %s10 = scalar_select 0, %s9, %s7
  %s11 = sshll.u32 %s0, 4
  %s12 = int_to_ptr.vmem [resolvable:$true] %s11
  %14 = dma.vmem_to_smem %s12, 16, [#allocation7], [#allocation6]
  %15 = dma.done [#allocation6], 16
  %16 = sfence
  loop: start=0, step=1, limit=20
  $region2: #{_f1_score_impl.1} parent=0 // loop_pre_header
    _
  $region3: #{_f1_score_impl.1} parent=0 // loop_header
    %s18 = sphi 0, %s22
    %p19 = scmp.ge.s32.totalorder %s18, 20
    %s25 = sphi 0, %s44
    %s26 = sphi 0, %s40
    %s27 = sphi 0, %s36
    %s28 = sphi 0, %s25
    %s29 = sphi 0, %s26
    %s30 = sphi 0, %s27
    %s31 = sphi 0, %s28
    %s32 = sphi 0, %s29
    %s33 = sphi 0, %s30
    %s49 = sphi 0, %s51
    %s52 = sphi 0, %s49
    %s53 = sphi 0, %s52
    %s69 = sphi 0, %s53
    %s77 = sphi 0, %s79
    %s80 = sphi 0, %s77
    %s81 = sphi 0, %s80
    %s97 = sphi 0, %s81
    %s103 = sphi 0, %s105
    %s106 = sphi 0, %s103
    %s107 = sphi 0, %s106
    %s123 = sphi 0, %s107
    %s129 = sphi 0, %s131
    %s132 = sphi 0, %s129
    %s133 = sphi 0, %s132
    %s149 = sphi 0, %s133
    %s155 = sphi 0, %s157
    %s158 = sphi 0, %s155
    %s159 = sphi 0, %s158
    %s175 = sphi 0, %s159
  $region4: #{_f1_score_impl.1} parent=0 // loop_header_branch
    %21 = sbr.rel (%p19) target = $region8
  $region5: #{_f1_score_impl.1} parent=0 // loop_body
    %s23 = ssub.s32 %s18, 1
    %s24 = ssub.s32 %s18, 2
    %s34 = sadd.s32 1, %s27
    %p35 = scmp.ge.s32.totalorder %s34, 3
    %s36 = scalar_select %p35, 0, %s34
    %s37 = sadd.s32 1, %s26
    %s38 = scalar_select %p35, %s37, %s26
    %p39 = scmp.ge.s32.totalorder %s38, 3
    %s40 = scalar_select %p39, 0, %s38
    %s41 = sadd.s32 1, %s25
    %s42 = scalar_select %p39, %s41, %s25
    %p43 = scmp.ge.s32.totalorder %s42, 2
    %s44 = scalar_select %p43, 0, %s42
    %s45 = ssub.s32 %s25, %s44
    %s46 = ssub.s32 %s26, %s40
    %s47 = sor.u32 %s45, %s46
    %p48 = scmp.eq.s32.totalorder %s47, 0
    %s50 = sadd.s32 %s49, 1
    %s51 = scalar_select %p48, %s49, %s50
    %p54 = pneg %p48
    %p55 = scmp.eq.s32.totalorder %s18, 17
    %p56 = por %p54, %p55
    %p57 = scmp.ne.s32.totalorder %s49, %s52
    %p58 = scmp.eq.s32.totalorder %s18, 0
    %p59 = por %p57, %p58
    %p60 = scmp.ne.s32.totalorder %s49, %s52
    %p61 = scmp.eq.s32.totalorder %s23, 17
    %p62 = por %p60, %p61
    %p63 = scmp.ne.s32.totalorder %s52, %s53
    %p64 = scmp.eq.s32.totalorder %s23, 0
    %p65 = por %p63, %p64
    %p66 = scmp.ne.s32.totalorder %s52, %s53
    %p67 = scmp.eq.s32.totalorder %s24, 17
    %p68 = por %p66, %p67
    %p70 = scmp.ne.s32.totalorder %s53, %s69
    %p71 = scmp.eq.s32.totalorder %s24, 0
    %p72 = por %p70, %p71
    %s73 = ssub.s32 %s25, %s44
    %s74 = ssub.s32 %s27, %s36
    %s75 = sor.u32 %s73, %s74
    %p76 = scmp.eq.s32.totalorder %s75, 0
    %s78 = sadd.s32 %s77, 1
    %s79 = scalar_select %p76, %s77, %s78
    %p82 = pneg %p76
    %p83 = scmp.eq.s32.totalorder %s18, 17
    %p84 = por %p82, %p83
    %p85 = scmp.ne.s32.totalorder %s77, %s80
    %p86 = scmp.eq.s32.totalorder %s18, 0
    %p87 = por %p85, %p86
    %p88 = scmp.ne.s32.totalorder %s77, %s80
    %p89 = scmp.eq.s32.totalorder %s23, 17
    %p90 = por %p88, %p89
    %p91 = scmp.ne.s32.totalorder %s80, %s81
    %p92 = scmp.eq.s32.totalorder %s23, 0
    %p93 = por %p91, %p92
    %p94 = scmp.ne.s32.totalorder %s80, %s81
    %p95 = scmp.eq.s32.totalorder %s24, 17
    %p96 = por %p94, %p95
    %p98 = scmp.ne.s32.totalorder %s81, %s97
    %p99 = scmp.eq.s32.totalorder %s24, 0
    %p100 = por %p98, %p99
    %s101 = ssub.s32 %s25, %s44
    %p102 = scmp.eq.s32.totalorder %s101, 0
    %s104 = sadd.s32 %s103, 1
    %s105 = scalar_select %p102, %s103, %s104
    %p108 = pneg %p102
    %p109 = scmp.eq.s32.totalorder %s18, 17
    %p110 = por %p108, %p109
    %p111 = scmp.ne.s32.totalorder %s103, %s106
    %p112 = scmp.eq.s32.totalorder %s18, 0
    %p113 = por %p111, %p112
    %p114 = scmp.ne.s32.totalorder %s103, %s106
    %p115 = scmp.eq.s32.totalorder %s23, 17
    %p116 = por %p114, %p115
    %p117 = scmp.ne.s32.totalorder %s106, %s107
    %p118 = scmp.eq.s32.totalorder %s23, 0
    %p119 = por %p117, %p118
    %p120 = scmp.ne.s32.totalorder %s106, %s107
    %p121 = scmp.eq.s32.totalorder %s24, 17
    %p122 = por %p120, %p121
    %p124 = scmp.ne.s32.totalorder %s107, %s123
    %p125 = scmp.eq.s32.totalorder %s24, 0
    %p126 = por %p124, %p125
    %s127 = ssub.s32 %s25, %s44
    %p128 = scmp.eq.s32.totalorder %s127, 0
    %s130 = sadd.s32 %s129, 1
    %s131 = scalar_select %p128, %s129, %s130
    %p134 = pneg %p128
    %p135 = scmp.eq.s32.totalorder %s18, 17
    %p136 = por %p134, %p135
    %p137 = scmp.ne.s32.totalorder %s129, %s132
    %p138 = scmp.eq.s32.totalorder %s18, 0
    %p139 = por %p137, %p138
    %p140 = scmp.ne.s32.totalorder %s129, %s132
    %p141 = scmp.eq.s32.totalorder %s23, 17
    %p142 = por %p140, %p141
    %p143 = scmp.ne.s32.totalorder %s132, %s133
    %p144 = scmp.eq.s32.totalorder %s23, 0
    %p145 = por %p143, %p144
    %p146 = scmp.ne.s32.totalorder %s132, %s133
    %p147 = scmp.eq.s32.totalorder %s24, 17
    %p148 = por %p146, %p147
    %p150 = scmp.ne.s32.totalorder %s133, %s149
    %p151 = scmp.eq.s32.totalorder %s24, 0
    %p152 = por %p150, %p151
    %s153 = ssub.s32 %s25, %s44
    %p154 = scmp.eq.s32.totalorder %s153, 0
    %s156 = sadd.s32 %s155, 1
    %s157 = scalar_select %p154, %s155, %s156
    %p160 = pneg %p154
    %p161 = scmp.eq.s32.totalorder %s18, 17
    %p162 = por %p160, %p161
    %p163 = scmp.ne.s32.totalorder %s155, %s158
    %p164 = scmp.eq.s32.totalorder %s18, 0
    %p165 = por %p163, %p164
    %p166 = scmp.ne.s32.totalorder %s155, %s158
    %p167 = scmp.eq.s32.totalorder %s23, 17
    %p168 = por %p166, %p167
    %p169 = scmp.ne.s32.totalorder %s158, %s159
    %p170 = scmp.eq.s32.totalorder %s23, 0
    %p171 = por %p169, %p170
    %p172 = scmp.ne.s32.totalorder %s158, %s159
    %p173 = scmp.eq.s32.totalorder %s24, 17
    %p174 = por %p172, %p173
    %p176 = scmp.ne.s32.totalorder %s159, %s175
    %p177 = scmp.eq.s32.totalorder %s24, 0
    %p178 = por %p176, %p177
    %p179 = scmp.le.s32.totalorder 1, %s18
    %p180 = scmp.lt.s32.totalorder %s18, 19
    %p181 = pnand %p179, %p180
    %p182 = pneg %p181
    // Predicated region
    $region9: #{_f1_score_impl.1} parent=5 // pred_check
      _
    $region10: #{_f1_score_impl.1} parent=5 // pred_check_branch
      %184 = sbr.rel (%p181) target = $region12
    $region11: #{_f1_score_impl.1} parent=5 // pred_region
      %s185 = ssub.s32 %s18, 1
    $region12: #{_f1_score_impl.1} parent=5 // pred_fallthru
      _
    %p186 = scmp.lt.s32.totalorder %s18, 18
    // Predicated region
    $region13: #{_f1_score_impl.1} parent=5 // pred_check
      %p187 = pneg %p186
    $region14: #{_f1_score_impl.1} parent=5 // pred_check_branch
      %189 = sbr.rel (%p187) target = $region16
    $region15: #{_f1_score_impl.1} parent=5 // pred_region
      // Predicated region
      $region17: #{_f1_score_impl.1} parent=15 // pred_check
        %p190 = pneg %p59
      $region18: #{_f1_score_impl.1} parent=15 // pred_check_branch
        %192 = sbr.rel (%p190) target = $region20
      $region19: #{_f1_score_impl.1} parent=15 // pred_region
        %p193 = scmp.lt.s32.totalorder %s25, 1
        %s194 = scalar_select %p193, %s25, 1
        %p195 = scmp.lt.s32.totalorder %s26, 2
        %s196 = scalar_select %p195, %s26, 2
        %s197 = smul.addr %s194, 3
        %s198 = sadd.s32 %s196, %s197
        %s199 = smul.addr %s198, 8
        %s200 = scalar_lea.vmem %s1, %s199
      $region20: #{_f1_score_impl.1} parent=15 // pred_fallthru
        _
      // Predicated region
      $region21: #{_f1_score_impl.1} parent=15 // pred_check
        %p201 = pneg %p87
      $region22: #{_f1_score_impl.1} parent=15 // pred_check_branch
        %203 = sbr.rel (%p201) target = $region24
      $region23: #{_f1_score_impl.1} parent=15 // pred_region
        %p204 = scmp.lt.s32.totalorder %s25, 1
        %s205 = scalar_select %p204, %s25, 1
        %p206 = scmp.lt.s32.totalorder %s27, 2
        %s207 = scalar_select %p206, %s27, 2
        %s208 = smul.addr %s205, 3
        %s209 = sadd.s32 %s207, %s208
        %s210 = smul.addr %s209, 8
        %s211 = scalar_lea.vmem %s2, %s210
      $region24: #{_f1_score_impl.1} parent=15 // pred_fallthru
        _
    $region16: #{_f1_score_impl.1} parent=5 // pred_fallthru
      _
    %p212 = scmp.le.s32.totalorder 1, %s18
    %p213 = scmp.lt.s32.totalorder %s18, 19
    %p214 = pnand %p212, %p213
    %p215 = pneg %p214
    // Predicated region
    $region25: #{_f1_score_impl.1} parent=5 // pred_check
      _
    $region26: #{_f1_score_impl.1} parent=5 // pred_check_branch
      %217 = sbr.rel (%p214) target = $region28
    $region27: #{_f1_score_impl.1} parent=5 // pred_region
      %s218 = ssub.s32 %s18, 1
      %p219 = scmp.lt.s32.totalorder %s28, 1
      %s220 = scalar_select %p219, %s28, 1
      %p221 = scmp.lt.s32.totalorder %s29, 2
      %s222 = scalar_select %p221, %s29, 2
      %s223 = smul.addr %s220, 3
      %s224 = sadd.s32 %s222, %s223
      %s225 = smul.addr %s224, 8
      %s226 = scalar_lea.vmem %s1, %s225
      %p227 = pneg %p65
      %p228 = pneg %p62
      %p229 = scmp.lt.s32.totalorder %s28, 1
      %s230 = scalar_select %p229, %s28, 1
      %p231 = scmp.lt.s32.totalorder %s30, 2
      %s232 = scalar_select %p231, %s30, 2
      %s233 = smul.addr %s230, 3
      %s234 = sadd.s32 %s232, %s233
      %s235 = smul.addr %s234, 8
      %s236 = scalar_lea.vmem %s2, %s235
      %p237 = pneg %p93
      %p238 = pneg %p90
      %p239 = pneg %p119
      %p240 = pneg %p116
      %p241 = scmp.lt.s32.totalorder %s28, 1
      %s242 = scalar_select %p241, %s28, 1
      %s243 = scalar_lea.vmem %s3, %s242
      %p244 = pneg %p145
      %p245 = pneg %p142
      %p246 = scmp.lt.s32.totalorder %s28, 1
      %s247 = scalar_select %p246, %s28, 1
      %s248 = scalar_lea.vmem %s4, %s247
      %p249 = pneg %p171
      %p250 = pneg %p168
      %p251 = scmp.lt.s32.totalorder %s28, 1
      %s252 = scalar_select %p251, %s28, 1
      %s253 = scalar_lea.vmem %s5, %s252
      %p254 = scmp.lt.s32.totalorder %s28, 1
      %s255 = scalar_select %p254, %s28, 1
      %p256 = scmp.lt.s32.totalorder %s29, 2
      %s257 = scalar_select %p256, %s29, 2
      %s258 = smul.addr %s255, 3
      %s259 = sadd.s32 %s257, %s258
      %s260 = smul.addr %s259, 8
      %s261 = scalar_lea.vmem %s1, %s260
      %p262 = scmp.lt.s32.totalorder %s28, 1
      %s263 = scalar_select %p262, %s28, 1
      %p264 = scmp.lt.s32.totalorder %s30, 2
      %s265 = scalar_select %p264, %s30, 2
      %s266 = smul.addr %s263, 3
      %s267 = sadd.s32 %s265, %s266
      %s268 = smul.addr %s267, 8
      %s269 = scalar_lea.vmem %s2, %s268
      %p270 = scmp.lt.s32.totalorder %s28, 1
      %s271 = scalar_select %p270, %s28, 1
      %s272 = scalar_lea.vmem %s3, %s271
      %p273 = scmp.lt.s32.totalorder %s28, 1
      %s274 = scalar_select %p273, %s28, 1
      %s275 = scalar_lea.vmem %s4, %s274
      %p276 = scmp.lt.s32.totalorder %s28, 1
      %s277 = scalar_select %p276, %s28, 1
      %s278 = scalar_lea.vmem %s5, %s277
      %s279 = sld [smem:[#allocation7]]
      %s280 = sld [smem:[#allocation7 + $0x1]]
      %s281 = sld [smem:[#allocation7 + $0x2]]
      %p282 = scmp.eq.s32.totalorder %s30, 0
      // Predicated region
      $region29: #{_f1_score_impl.1} parent=27 // pred_check
        %p283 = pneg %p282
      $region30: #{_f1_score_impl.1} parent=27 // pred_check_branch
        %285 = sbr.rel (%p283) target = $region32
      $region31: #{_f1_score_impl.1} parent=27 // pred_region
        %286 = vst [vmem:[#allocation2] sm:$0xff] 1e+30
        %287 = vst [vmem:[#allocation2 + $0x8] sm:$0xff] 1e+30
        %288 = vst [vmem:[#allocation2 + $0x10] sm:$0xff] 1e+30
        %289 = vst [vmem:[#allocation2 + $0x18] sm:$0xff] 1e+30
        %290 = vst [vmem:[#allocation2 + $0x20] sm:$0xff] 1e+30
        %291 = vst [vmem:[#allocation2 + $0x28] sm:$0xff] 1e+30
        %292 = vst [vmem:[#allocation2 + $0x30] sm:$0xff] 1e+30
        %293 = vst [vmem:[#allocation2 + $0x38] sm:$0xff] 1e+30
        %294 = vst [vmem:[#allocation2 + $0x40] sm:$0xff] 1e+30
        %295 = vst [vmem:[#allocation2 + $0x48] sm:$0xff] 1e+30
        %296 = vst [vmem:[#allocation2 + $0x50] sm:$0xff] 1e+30
        %297 = vst [vmem:[#allocation2 + $0x58] sm:$0xff] 1e+30
        %298 = vst [vmem:[#allocation2 + $0x60] sm:$0xff] 1e+30
        %299 = vst [vmem:[#allocation2 + $0x68] sm:$0xff] 1e+30
        %300 = vst [vmem:[#allocation2 + $0x70] sm:$0xff] 1e+30
        %301 = vst [vmem:[#allocation2 + $0x78] sm:$0xff] 1e+30
      $region32: #{_f1_score_impl.1} parent=27 // pred_fallthru
        _
      %v302 = vld [vmem:[%s261] sm:$0xff]
      %v303 = vld [vmem:[%s269] sm:$0xff]
      %304 = vxpose.xlu0.b32.start [1/16] %v302, 128
      %305 = vxpose.xlu0.b32.cont [2/16] 0.0, 128
      %306 = vxpose.xlu0.b32.cont [3/16] 0.0, 128
      %307 = vxpose.xlu0.b32.cont [4/16] 0.0, 128
      %308 = vxpose.xlu0.b32.cont [5/16] 0.0, 128
      %309 = vxpose.xlu0.b32.cont [6/16] 0.0, 128
      %310 = vxpose.xlu0.b32.cont [7/16] 0.0, 128
      %311 = vxpose.xlu0.b32.cont [8/16] 0.0, 128
      %312 = vxpose.xlu0.b32.cont [9/16] 0.0, 128
      %313 = vxpose.xlu0.b32.cont [10/16] 0.0, 128
      %314 = vxpose.xlu0.b32.cont [11/16] 0.0, 128
      %315 = vxpose.xlu0.b32.cont [12/16] 0.0, 128
      %316 = vxpose.xlu0.b32.cont [13/16] 0.0, 128
      %317 = vxpose.xlu0.b32.cont [14/16] 0.0, 128
      %318 = vxpose.xlu0.b32.cont [15/16] 0.0, 128
      %319 = vxpose.xlu0.b32.end [16/16] 0.0, 128
      %v320 = vpop.trf.xlu0
      %v321 = vpop.trf.xlu0
      %v322 = vpop.trf.xlu0
      %v323 = vpop.trf.xlu0
      %v324 = vpop.trf.xlu0
      %v325 = vpop.trf.xlu0
      %v326 = vpop.trf.xlu0
      %v327 = vpop.trf.xlu0
      %v328 = vpop.trf.xlu0
      %v329 = vpop.trf.xlu0
      %v330 = vpop.trf.xlu0
      %v331 = vpop.trf.xlu0
      %v332 = vpop.trf.xlu0
      %v333 = vpop.trf.xlu0
      %v334 = vpop.trf.xlu0
      %v335 = vpop.trf.xlu0
      %vm336 = vcmask 64512
      %v338 = vsel %vm336, %v320, 0
      %v341 = vsel %vm336, %v321, 0
      %v344 = vsel %vm336, %v322, 0
      %v347 = vsel %vm336, %v323, 0
      %v350 = vsel %vm336, %v324, 0
      %v353 = vsel %vm336, %v325, 0
      %v356 = vsel %vm336, %v326, 0
      %v359 = vsel %vm336, %v327, 0
      %v362 = vsel %vm336, %v328, 0
      %v365 = vsel %vm336, %v329, 0
      %v368 = vsel %vm336, %v330, 0
      %v371 = vsel %vm336, %v331, 0
      %v374 = vsel %vm336, %v332, 0
      %v377 = vsel %vm336, %v333, 0
      %v380 = vsel %vm336, %v334, 0
      %v383 = vsel %vm336, %v335, 0
      %385 = vmatprep.subr.mxu0 0.0
      %386 = vmatpush1.msra.mxu0 0.0
      %387 = vmatprep.subr.mxu0 0.0
      %388 = vmatpush1.msra.mxu0 0.0
      %389 = vmatprep.subr.mxu0 0.0
      %390 = vmatpush1.msra.mxu0 0.0
      %391 = vmatprep.subr.mxu0 0.0
      %392 = vmatpush1.msra.mxu0 0.0
      %393 = vmatprep.subr.mxu0 0.0
      %394 = vmatpush1.msra.mxu0 0.0
      %395 = vmatprep.subr.mxu0 0.0
      %396 = vmatpush1.msra.mxu0 0.0
      %397 = vmatprep.subr.mxu0 0.0
      %398 = vmatpush1.msra.mxu0 0.0
      %399 = vmatprep.subr.mxu0 0.0
      %400 = vmatpush1.msra.mxu0 0.0
      %401 = vmatprep.subr.mxu0 0.0
      %402 = vmatpush1.msra.mxu0 0.0
      %403 = vmatprep.subr.mxu0 0.0
      %404 = vmatpush1.msra.mxu0 0.0
      %405 = vmatprep.subr.mxu0 0.0
      %406 = vmatpush1.msra.mxu0 0.0
      %407 = vmatprep.subr.mxu0 0.0
      %408 = vmatpush1.msra.mxu0 0.0
      %409 = vmatprep.subr.mxu0 0.0
      %410 = vmatpush1.msra.mxu0 0.0
      %411 = vmatprep.subr.mxu0 0.0
      %412 = vmatpush1.msra.mxu0 0.0
      %413 = vmatprep.subr.mxu0 0.0
      %414 = vmatpush1.msra.mxu0 0.0
      %415 = vmatprep.subr.mxu0 0.0
      %416 = vmatpush1.msra.mxu0 %v303
      %417 = vmatprep.subr.mxu0 0.0
      %418 = vmatpush2.msra.mxu0 0.0
      %419 = vmatprep.subr.mxu0 0.0
      %420 = vmatpush2.msra.mxu0 0.0
      %421 = vmatprep.subr.mxu0 0.0
      %422 = vmatpush2.msra.mxu0 0.0
      %423 = vmatprep.subr.mxu0 0.0
      %424 = vmatpush2.msra.mxu0 0.0
      %425 = vmatprep.subr.mxu0 0.0
      %426 = vmatpush2.msra.mxu0 0.0
      %427 = vmatprep.subr.mxu0 0.0
      %428 = vmatpush2.msra.mxu0 0.0
      %429 = vmatprep.subr.mxu0 0.0
      %430 = vmatpush2.msra.mxu0 0.0
      %431 = vmatprep.subr.mxu0 0.0
      %432 = vmatpush2.msra.mxu0 0.0
      %433 = vmatprep.subr.mxu0 0.0
      %434 = vmatpush2.msra.mxu0 0.0
      %435 = vmatprep.subr.mxu0 0.0
      %436 = vmatpush2.msra.mxu0 0.0
      %437 = vmatprep.subr.mxu0 0.0
      %438 = vmatpush2.msra.mxu0 0.0
      %439 = vmatprep.subr.mxu0 0.0
      %440 = vmatpush2.msra.mxu0 0.0
      %441 = vmatprep.subr.mxu0 0.0
      %442 = vmatpush2.msra.mxu0 0.0
      %443 = vmatprep.subr.mxu0 0.0
      %444 = vmatpush2.msra.mxu0 0.0
      %445 = vmatprep.subr.mxu0 0.0
      %446 = vmatpush2.msra.mxu0 0.0
      %447 = vmatprep.subr.mxu0 0.0
      %448 = vmatpush2.msra.mxu0 0.0
      %449 = vmatprep.mubr.f32.mxu0 0.0
      %450 = vmatmul.mubr.f32.gmra.mxu0 %v338
      %v451 = vpop.f32.mrf.mxu0
      %v452 = vadd.f32 0.0, %v451
      %v453 = vpop.f32.mrf.mxu0
      %454 = vmatprep.mubr.f32.mxu0 0.0
      %455 = vmatmul.mubr.f32.gmra.mxu0 %v341
      %v456 = vpop.f32.mrf.mxu0
      %v457 = vadd.f32 0.0, %v456
      %v458 = vpop.f32.mrf.mxu0
      %459 = vmatprep.mubr.f32.mxu0 0.0
      %460 = vmatmul.mubr.f32.gmra.mxu0 %v344
      %v461 = vpop.f32.mrf.mxu0
      %v462 = vadd.f32 0.0, %v461
      %v463 = vpop.f32.mrf.mxu0
      %464 = vmatprep.mubr.f32.mxu0 0.0
      %465 = vmatmul.mubr.f32.gmra.mxu0 %v347
      %v466 = vpop.f32.mrf.mxu0
      %v467 = vadd.f32 0.0, %v466
      %v468 = vpop.f32.mrf.mxu0
      %469 = vmatprep.mubr.f32.mxu0 0.0
      %470 = vmatmul.mubr.f32.gmra.mxu0 %v350
      %v471 = vpop.f32.mrf.mxu0
      %v472 = vadd.f32 0.0, %v471
      %v473 = vpop.f32.mrf.mxu0
      %474 = vmatprep.mubr.f32.mxu0 0.0
      %475 = vmatmul.mubr.f32.gmra.mxu0 %v353
      %v476 = vpop.f32.mrf.mxu0
      %v477 = vadd.f32 0.0, %v476
      %v478 = vpop.f32.mrf.mxu0
      %479 = vmatprep.mubr.f32.mxu0 0.0
      %480 = vmatmul.mubr.f32.gmra.mxu0 %v356
      %v481 = vpop.f32.mrf.mxu0
      %v482 = vadd.f32 0.0, %v481
      %v483 = vpop.f32.mrf.mxu0
      %484 = vmatprep.mubr.f32.mxu0 0.0
      %485 = vmatmul.mubr.f32.gmra.mxu0 %v359
      %v486 = vpop.f32.mrf.mxu0
      %v487 = vadd.f32 0.0, %v486
      %v488 = vpop.f32.mrf.mxu0
      %489 = vmatprep.mubr.f32.mxu0 0.0
      %490 = vmatmul.mubr.f32.gmra.mxu0 %v362
      %v491 = vpop.f32.mrf.mxu0
      %v492 = vadd.f32 0.0, %v491
      %v493 = vpop.f32.mrf.mxu0
      %494 = vmatprep.mubr.f32.mxu0 0.0
      %495 = vmatmul.mubr.f32.gmra.mxu0 %v365
      %v496 = vpop.f32.mrf.mxu0
      %v497 = vadd.f32 0.0, %v496
      %v498 = vpop.f32.mrf.mxu0
      %499 = vmatprep.mubr.f32.mxu0 0.0
      %500 = vmatmul.mubr.f32.gmra.mxu0 %v368
      %v501 = vpop.f32.mrf.mxu0
      %v502 = vadd.f32 0.0, %v501
      %v503 = vpop.f32.mrf.mxu0
      %504 = vmatprep.mubr.f32.mxu0 0.0
      %505 = vmatmul.mubr.f32.gmra.mxu0 %v371
      %v506 = vpop.f32.mrf.mxu0
      %v507 = vadd.f32 0.0, %v506
      %v508 = vpop.f32.mrf.mxu0
      %509 = vmatprep.mubr.f32.mxu0 0.0
      %510 = vmatmul.mubr.f32.gmra.mxu0 %v374
      %v511 = vpop.f32.mrf.mxu0
      %v512 = vadd.f32 0.0, %v511
      %v513 = vpop.f32.mrf.mxu0
      %514 = vmatprep.mubr.f32.mxu0 0.0
      %515 = vmatmul.mubr.f32.gmra.mxu0 %v377
      %v516 = vpop.f32.mrf.mxu0
      %v517 = vadd.f32 0.0, %v516
      %v518 = vpop.f32.mrf.mxu0
      %519 = vmatprep.mubr.f32.mxu0 0.0
      %520 = vmatmul.mubr.f32.gmra.mxu0 %v380
      %v521 = vpop.f32.mrf.mxu0
      %v522 = vadd.f32 0.0, %v521
      %v523 = vpop.f32.mrf.mxu0
      %524 = vmatprep.mubr.f32.mxu0 0.0
      %525 = vmatmul.mubr.f32.gmra.mxu0 %v383
      %v526 = vpop.f32.mrf.mxu0
      %v527 = vadd.f32 0.0, %v526
      %v528 = vpop.f32.mrf.mxu0
      %529 = vdwg.mxu0
      %v530 = vmin.f32 %v452, %v457
      %v531 = vmin.f32 %v530, %v462
      %v532 = vmin.f32 %v531, %v467
      %v533 = vmin.f32 %v532, %v472
      %v534 = vmin.f32 %v533, %v477
      %v535 = vmin.f32 %v534, %v482
      %v536 = vmin.f32 %v535, %v487
      %v537 = vmin.f32 %v536, %v492
      %v538 = vmin.f32 %v537, %v497
      %v539 = vmin.f32 %v538, %v502
      %v540 = vmin.f32 %v539, %v507
      %v541 = vmin.f32 %v540, %v512
      %v542 = vmin.f32 %v541, %v517
      %v543 = vmin.f32 %v542, %v522
      %v544 = vmin.f32 %v543, %v527
      %v545 = vld [vmem:[#allocation2] sm:$0xff]
      %v546 = vld [vmem:[#allocation2 + $0x8] sm:$0xff]
      %v547 = vld [vmem:[#allocation2 + $0x10] sm:$0xff]
      %v548 = vld [vmem:[#allocation2 + $0x18] sm:$0xff]
      %v549 = vld [vmem:[#allocation2 + $0x20] sm:$0xff]
      %v550 = vld [vmem:[#allocation2 + $0x28] sm:$0xff]
      %v551 = vld [vmem:[#allocation2 + $0x30] sm:$0xff]
      %v552 = vld [vmem:[#allocation2 + $0x38] sm:$0xff]
      %v553 = vld [vmem:[#allocation2 + $0x40] sm:$0xff]
      %v554 = vld [vmem:[#allocation2 + $0x48] sm:$0xff]
      %v555 = vld [vmem:[#allocation2 + $0x50] sm:$0xff]
      %v556 = vld [vmem:[#allocation2 + $0x58] sm:$0xff]
      %v557 = vld [vmem:[#allocation2 + $0x60] sm:$0xff]
      %v558 = vld [vmem:[#allocation2 + $0x68] sm:$0xff]
      %v559 = vld [vmem:[#allocation2 + $0x70] sm:$0xff]
      %v560 = vld [vmem:[#allocation2 + $0x78] sm:$0xff]
      %v561 = vmin.f32 %v545, %v452
      %v562 = vmin.f32 %v546, %v457
      %v563 = vmin.f32 %v547, %v462
      %v564 = vmin.f32 %v548, %v467
      %v565 = vmin.f32 %v549, %v472
      %v566 = vmin.f32 %v550, %v477
      %v567 = vmin.f32 %v551, %v482
      %v568 = vmin.f32 %v552, %v487
      %v569 = vmin.f32 %v553, %v492
      %v570 = vmin.f32 %v554, %v497
      %v571 = vmin.f32 %v555, %v502
      %v572 = vmin.f32 %v556, %v507
      %v573 = vmin.f32 %v557, %v512
      %v574 = vmin.f32 %v558, %v517
      %v575 = vmin.f32 %v559, %v522
      %v576 = vmin.f32 %v560, %v527
      %577 = vst [vmem:[#allocation2] sm:$0xff] %v561
      %578 = vst [vmem:[#allocation2 + $0x8] sm:$0xff] %v562
      %579 = vst [vmem:[#allocation2 + $0x10] sm:$0xff] %v563
      %580 = vst [vmem:[#allocation2 + $0x18] sm:$0xff] %v564
      %581 = vst [vmem:[#allocation2 + $0x20] sm:$0xff] %v565
      %582 = vst [vmem:[#allocation2 + $0x28] sm:$0xff] %v566
      %583 = vst [vmem:[#allocation2 + $0x30] sm:$0xff] %v567
      %584 = vst [vmem:[#allocation2 + $0x38] sm:$0xff] %v568
      %585 = vst [vmem:[#allocation2 + $0x40] sm:$0xff] %v569
      %586 = vst [vmem:[#allocation2 + $0x48] sm:$0xff] %v570
      %587 = vst [vmem:[#allocation2 + $0x50] sm:$0xff] %v571
      %588 = vst [vmem:[#allocation2 + $0x58] sm:$0xff] %v572
      %589 = vst [vmem:[#allocation2 + $0x60] sm:$0xff] %v573
      %590 = vst [vmem:[#allocation2 + $0x68] sm:$0xff] %v574
      %591 = vst [vmem:[#allocation2 + $0x70] sm:$0xff] %v575
      %592 = vst [vmem:[#allocation2 + $0x78] sm:$0xff] %v576
      %s593 = smul.u32 %s30, 8
      %p594 = scmp.eq.s32.totalorder %s29, 0
      // Predicated region
      $region33: #{_f1_score_impl.1} parent=27 // pred_check
        %p595 = pneg %p594
      $region34: #{_f1_score_impl.1} parent=27 // pred_check_branch
        %597 = sbr.rel (%p595) target = $region36
      $region35: #{_f1_score_impl.1} parent=27 // pred_region
        %s598 = scalar_lea.vmem [#allocation3], %s593
        %599 = vst [vmem:[%s598] sm:$0xff] %v544
      $region36: #{_f1_score_impl.1} parent=27 // pred_fallthru
        _
      %p600 = scmp.gt.s32.totalorder %s29, 0
      // Predicated region
      $region37: #{_f1_score_impl.1} parent=27 // pred_check
        %p601 = pneg %p600
      $region38: #{_f1_score_impl.1} parent=27 // pred_check_branch
        %603 = sbr.rel (%p601) target = $region40
      $region39: #{_f1_score_impl.1} parent=27 // pred_region
        %s604 = scalar_lea.vmem [#allocation3], %s593
        %v605 = vld [vmem:[%s604] sm:$0xff]
        %v606 = vmin.f32 %v605, %v544
        %607 = vst [vmem:[%s604] sm:$0xff] %v606
      $region40: #{_f1_score_impl.1} parent=27 // pred_fallthru
        _
      %p608 = scmp.eq.s32.totalorder %s30, 2
      // Predicated region
      $region41: #{_f1_score_impl.1} parent=27 // pred_check
        %p609 = pneg %p608
      $region42: #{_f1_score_impl.1} parent=27 // pred_check_branch
        %611 = sbr.rel (%p609) target = $region44
      $region43: #{_f1_score_impl.1} parent=27 // pred_region
        %v612 = vld [vmem:[#allocation2] sm:$0xff]
        %v613 = vld [vmem:[#allocation2 + $0x8] sm:$0xff]
        %v614 = vld [vmem:[#allocation2 + $0x10] sm:$0xff]
        %v615 = vld [vmem:[#allocation2 + $0x18] sm:$0xff]
        %v616 = vld [vmem:[#allocation2 + $0x20] sm:$0xff]
        %v617 = vld [vmem:[#allocation2 + $0x28] sm:$0xff]
        %v618 = vld [vmem:[#allocation2 + $0x30] sm:$0xff]
        %v619 = vld [vmem:[#allocation2 + $0x38] sm:$0xff]
        %v620 = vld [vmem:[#allocation2 + $0x40] sm:$0xff]
        %v621 = vld [vmem:[#allocation2 + $0x48] sm:$0xff]
        %v622 = vld [vmem:[#allocation2 + $0x50] sm:$0xff]
        %v623 = vld [vmem:[#allocation2 + $0x58] sm:$0xff]
        %v624 = vld [vmem:[#allocation2 + $0x60] sm:$0xff]
        %v625 = vld [vmem:[#allocation2 + $0x68] sm:$0xff]
        %v626 = vld [vmem:[#allocation2 + $0x70] sm:$0xff]
        %v627 = vld [vmem:[#allocation2 + $0x78] sm:$0xff]
        %628 = vmin.xlane.f32.xlu0 %v612
        %v629 = vpop.xlane.xlu0 %628
        %630 = vmin.xlane.f32.xlu0 %v613
        %v631 = vpop.xlane.xlu0 %630
        %632 = vmin.xlane.f32.xlu0 %v614
        %v633 = vpop.xlane.xlu0 %632
        %634 = vmin.xlane.f32.xlu0 %v615
        %v635 = vpop.xlane.xlu0 %634
        %636 = vmin.xlane.f32.xlu0 %v616
        %v637 = vpop.xlane.xlu0 %636
        %638 = vmin.xlane.f32.xlu0 %v617
        %v639 = vpop.xlane.xlu0 %638
        %640 = vmin.xlane.f32.xlu0 %v618
        %v641 = vpop.xlane.xlu0 %640
        %642 = vmin.xlane.f32.xlu0 %v619
        %v643 = vpop.xlane.xlu0 %642
        %644 = vmin.xlane.f32.xlu0 %v620
        %v645 = vpop.xlane.xlu0 %644
        %646 = vmin.xlane.f32.xlu0 %v621
        %v647 = vpop.xlane.xlu0 %646
        %648 = vmin.xlane.f32.xlu0 %v622
        %v649 = vpop.xlane.xlu0 %648
        %650 = vmin.xlane.f32.xlu0 %v623
        %v651 = vpop.xlane.xlu0 %650
        %652 = vmin.xlane.f32.xlu0 %v624
        %v653 = vpop.xlane.xlu0 %652
        %654 = vmin.xlane.f32.xlu0 %v625
        %v655 = vpop.xlane.xlu0 %654
        %656 = vmin.xlane.f32.xlu0 %v626
        %v657 = vpop.xlane.xlu0 %656
        %658 = vmin.xlane.f32.xlu0 %v627
        %v659 = vpop.xlane.xlu0 %658
        %v660 = vstv %s279
        %vm661 = vcmp.lt.f32.partialorder %v629, %v660
        %vm662 = vcmp.lt.f32.partialorder %v631, %v660
        %vm663 = vcmp.lt.f32.partialorder %v633, %v660
        %vm664 = vcmp.lt.f32.partialorder %v635, %v660
        %vm665 = vcmp.lt.f32.partialorder %v637, %v660
        %vm666 = vcmp.lt.f32.partialorder %v639, %v660
        %vm667 = vcmp.lt.f32.partialorder %v641, %v660
        %vm668 = vcmp.lt.f32.partialorder %v643, %v660
        %vm669 = vcmp.lt.f32.partialorder %v645, %v660
        %vm670 = vcmp.lt.f32.partialorder %v647, %v660
        %vm671 = vcmp.lt.f32.partialorder %v649, %v660
        %vm672 = vcmp.lt.f32.partialorder %v651, %v660
        %vm673 = vcmp.lt.f32.partialorder %v653, %v660
        %vm674 = vcmp.lt.f32.partialorder %v655, %v660
        %vm675 = vcmp.lt.f32.partialorder %v657, %v660
        %vm676 = vcmp.lt.f32.partialorder %v659, %v660
        %v677 = vsel %vm661, 1, 0
        %v678 = vsel %vm662, 1, 0
        %v679 = vsel %vm663, 1, 0
        %v680 = vsel %vm664, 1, 0
        %v681 = vsel %vm665, 1, 0
        %v682 = vsel %vm666, 1, 0
        %v683 = vsel %vm667, 1, 0
        %v684 = vsel %vm668, 1, 0
        %v685 = vsel %vm669, 1, 0
        %v686 = vsel %vm670, 1, 0
        %v687 = vsel %vm671, 1, 0
        %v688 = vsel %vm672, 1, 0
        %v689 = vsel %vm673, 1, 0
        %v690 = vsel %vm674, 1, 0
        %v691 = vsel %vm675, 1, 0
        %v692 = vsel %vm676, 1, 0
        %v693 = vcvt.s32.f32 %v677
        %v694 = vcvt.s32.f32 %v678
        %v695 = vcvt.s32.f32 %v679
        %v696 = vcvt.s32.f32 %v680
        %v697 = vcvt.s32.f32 %v681
        %v698 = vcvt.s32.f32 %v682
        %v699 = vcvt.s32.f32 %v683
        %v700 = vcvt.s32.f32 %v684
        %v701 = vcvt.s32.f32 %v685
        %v702 = vcvt.s32.f32 %v686
        %v703 = vcvt.s32.f32 %v687
        %v704 = vcvt.s32.f32 %v688
        %v705 = vcvt.s32.f32 %v689
        %v706 = vcvt.s32.f32 %v690
        %v707 = vcvt.s32.f32 %v691
        %v708 = vcvt.s32.f32 %v692
        %vm709 = vcmask 7168
        %v710 = vsel %vm709, %v693, 0.0
        %v711 = vsel %vm709, %v694, 0.0
        %v712 = vadd.f32 %v710, %v711
        %v713 = vsel %vm709, %v695, 0.0
        %v714 = vadd.f32 %v712, %v713
        %v715 = vsel %vm709, %v696, 0.0
        %v716 = vadd.f32 %v714, %v715
        %v717 = vsel %vm709, %v697, 0.0
        %v718 = vadd.f32 %v716, %v717
        %v719 = vsel %vm709, %v698, 0.0
        %v720 = vadd.f32 %v718, %v719
        %v721 = vsel %vm709, %v699, 0.0
        %v722 = vadd.f32 %v720, %v721
        %v723 = vsel %vm709, %v700, 0.0
        %v724 = vadd.f32 %v722, %v723
        %v725 = vsel %vm709, %v701, 0.0
        %v726 = vadd.f32 %v724, %v725
        %v727 = vsel %vm709, %v702, 0.0
        %v728 = vadd.f32 %v726, %v727
        %v729 = vsel %vm709, %v703, 0.0
        %v730 = vadd.f32 %v728, %v729
        %v731 = vsel %vm709, %v704, 0.0
        %v732 = vadd.f32 %v730, %v731
        %v733 = vsel %vm709, %v705, 0.0
        %v734 = vadd.f32 %v732, %v733
        %v735 = vsel %vm709, %v706, 0.0
        %v736 = vadd.f32 %v734, %v735
        %v737 = vsel %vm709, %v707, 0.0
        %v738 = vadd.f32 %v736, %v737
        %v739 = vsel %vm709, %v708, 0.0
        %v740 = vadd.f32 %v738, %v739
        %741 = vadd.xlane.f32.xlu0 %v740
        %v742 = vpop.xlane.xlu0 %741
        %v743 = vrot.slane %v742, 4
        %v744 = vadd.f32 %v742, %v743
        %v745 = vrot.slane %v744, 2
        %v746 = vadd.f32 %v744, %v745
        %v747 = vrot.slane %v746, 1
        %v748 = vadd.f32 %v746, %v747
        %s749 = vtos %v748
        %s750 = sld [smem:[#allocation4]]
        %s751 = scalar_select %p594, 0.0, %s750
        %s752 = sadd.f32 %s751, %s749
        %s753 = scalar_lea.smem [#allocation4], 0
        %754 = sst [smem:[%s753]] %s752
      $region44: #{_f1_score_impl.1} parent=27 // pred_fallthru
        _
      %p755 = scmp.eq.s32.totalorder %s29, 2
      // Predicated region
      $region45: #{_f1_score_impl.1} parent=27 // pred_check
        %p756 = pneg %p755
      $region46: #{_f1_score_impl.1} parent=27 // pred_check_branch
        %758 = sbr.rel (%p756) target = $region48
      $region47: #{_f1_score_impl.1} parent=27 // pred_region
        %s759 = scalar_lea.vmem [#allocation3], %s593
        %v760 = vld [vmem:[%s759] sm:$0xff]
        %v761 = vrot.slane %v760, 4
        %v762 = vmin.f32 %v760, %v761
        %v763 = vrot.slane %v762, 2
        %v764 = vmin.f32 %v762, %v763
        %v765 = vrot.slane %v764, 1
        %v766 = vmin.f32 %v764, %v765
        %v767 = vstv %s279
        %vm768 = vcmp.lt.f32.partialorder %v766, %v767
        %v769 = vsel %vm768, 1, 0
        %v770 = vcvt.s32.f32 %v769
        %vm771 = vcmask 1040384
        %v772 = vsel %vm771, %v770, 0.0
        %773 = vadd.xlane.f32.xlu0 %v772
        %v774 = vpop.xlane.xlu0 %773
        %v775 = vrot.slane %v774, 4
        %v776 = vadd.f32 %v774, %v775
        %v777 = vrot.slane %v776, 2
        %v778 = vadd.f32 %v776, %v777
        %v779 = vrot.slane %v778, 1
        %v780 = vadd.f32 %v778, %v779
        %s781 = vtos %v780
        %s782 = sld [smem:[#allocation5]]
        %s783 = scalar_select %p282, 0.0, %s782
        %s784 = sadd.f32 %s783, %s781
        %s785 = scalar_lea.smem [#allocation5], 0
        %786 = sst [smem:[%s785]] %s784
      $region48: #{_f1_score_impl.1} parent=27 // pred_fallthru
        _
      %p787 = pnand %p755, %p608
      %p788 = pneg %p787
      // Predicated region
      $region49: #{_f1_score_impl.1} parent=27 // pred_check
        _
      $region50: #{_f1_score_impl.1} parent=27 // pred_check_branch
        %790 = sbr.rel (%p787) target = $region52
      $region51: #{_f1_score_impl.1} parent=27 // pred_region
        %s791 = sld [smem:[#allocation4]]
        %s792 = smul.f32 %s791, %s280
        %s793 = sld [smem:[#allocation5]]
        %s794 = smul.f32 %s793, %s281
        %s795 = sadd.f32 %s792, %s794
        %p796 = scmp.gt.f32.partialorder %s795, 0.0
        %s797 = smul.f32 %s792, 2.0
        %s798 = smul.f32 %s797, %s794
        %s799 = scalar_select %p796, %s795, 1.0
        %v800 = vstv %s799
        %v801 = vrcp.pop %v800
        %s802 = vtos %v801
        %s803 = smul.f32 %s798, %s802
        %s804 = scalar_select %p796, %s803, 0.0
        %v805 = vstv %s804
        %806 = vst [vmem:[%s272] sm:$0x1] %v805
        %v807 = vstv %s792
        %808 = vst [vmem:[%s275] sm:$0x1] %v807
        %v809 = vstv %s794
        %810 = vst [vmem:[%s278] sm:$0x1] %v809
      $region52: #{_f1_score_impl.1} parent=27 // pred_fallthru
        _
      %p811 = scmp.lt.s32.totalorder %s28, 1
      %s812 = scalar_select %p811, %s28, 1
      %s813 = scalar_lea.vmem %s3, %s812
      %p814 = scmp.lt.s32.totalorder %s28, 1
      %s815 = scalar_select %p814, %s28, 1
      %s816 = scalar_lea.vmem %s4, %s815
      %p817 = scmp.lt.s32.totalorder %s28, 1
      %s818 = scalar_select %p817, %s28, 1
      %s819 = scalar_lea.vmem %s5, %s818
      // Predicated region
      $region53: #{_f1_score_impl.1} parent=27 // pred_check
        %p820 = pneg %p116
      $region54: #{_f1_score_impl.1} parent=27 // pred_check_branch
        %822 = sbr.rel (%p820) target = $region56
      $region55: #{_f1_score_impl.1} parent=27 // pred_region
        _
      $region56: #{_f1_score_impl.1} parent=27 // pred_fallthru
        _
      // Predicated region
      $region57: #{_f1_score_impl.1} parent=27 // pred_check
        %p823 = pneg %p142
      $region58: #{_f1_score_impl.1} parent=27 // pred_check_branch
        %825 = sbr.rel (%p823) target = $region60
      $region59: #{_f1_score_impl.1} parent=27 // pred_region
        _
      $region60: #{_f1_score_impl.1} parent=27 // pred_fallthru
        _
      // Predicated region
      $region61: #{_f1_score_impl.1} parent=27 // pred_check
        %p826 = pneg %p168
      $region62: #{_f1_score_impl.1} parent=27 // pred_check_branch
        %828 = sbr.rel (%p826) target = $region64
      $region63: #{_f1_score_impl.1} parent=27 // pred_region
        _
      $region64: #{_f1_score_impl.1} parent=27 // pred_fallthru
        _
    $region28: #{_f1_score_impl.1} parent=5 // pred_fallthru
      _
    %p829 = scmp.le.s32.totalorder 2, %s18
    // Predicated region
    $region65: #{_f1_score_impl.1} parent=5 // pred_check
      %p830 = pneg %p829
    $region66: #{_f1_score_impl.1} parent=5 // pred_check_branch
      %832 = sbr.rel (%p830) target = $region68
    $region67: #{_f1_score_impl.1} parent=5 // pred_region
      %s833 = ssub.s32 %s18, 2
      // Predicated region
      $region69: #{_f1_score_impl.1} parent=67 // pred_check
        %p834 = pneg %p122
      $region70: #{_f1_score_impl.1} parent=67 // pred_check_branch
        %836 = sbr.rel (%p834) target = $region72
      $region71: #{_f1_score_impl.1} parent=67 // pred_region
        %p837 = scmp.lt.s32.totalorder %s31, 1
        %s838 = scalar_select %p837, %s31, 1
        %s839 = scalar_lea.vmem %s3, %s838
      $region72: #{_f1_score_impl.1} parent=67 // pred_fallthru
        _
      // Predicated region
      $region73: #{_f1_score_impl.1} parent=67 // pred_check
        %p840 = pneg %p148
      $region74: #{_f1_score_impl.1} parent=67 // pred_check_branch
        %842 = sbr.rel (%p840) target = $region76
      $region75: #{_f1_score_impl.1} parent=67 // pred_region
        %p843 = scmp.lt.s32.totalorder %s31, 1
        %s844 = scalar_select %p843, %s31, 1
        %s845 = scalar_lea.vmem %s4, %s844
      $region76: #{_f1_score_impl.1} parent=67 // pred_fallthru
        _
      // Predicated region
      $region77: #{_f1_score_impl.1} parent=67 // pred_check
        %p846 = pneg %p174
      $region78: #{_f1_score_impl.1} parent=67 // pred_check_branch
        %848 = sbr.rel (%p846) target = $region80
      $region79: #{_f1_score_impl.1} parent=67 // pred_region
        %p849 = scmp.lt.s32.totalorder %s31, 1
        %s850 = scalar_select %p849, %s31, 1
        %s851 = scalar_lea.vmem %s5, %s850
      $region80: #{_f1_score_impl.1} parent=67 // pred_fallthru
        _
    $region68: #{_f1_score_impl.1} parent=5 // pred_fallthru
      _
  $region6: #{_f1_score_impl.1} parent=0 // loop_footer
    %s22 = sadd.s32 1, %s18
  $region7: #{_f1_score_impl.1} parent=0 // loop_footer_branch
    %17 = sbr.rel target = $region3
  $region8: #{_f1_score_impl.1} parent=0 // loop_exit
    _

</llo_original>
